<compile_context>
chip_gen: v5e
topology: v5e:2x2
jax: 0.10.0
libtpu: 0.0.40
codegen_flags: <defaults>
</compile_context>

<pallas_src>
import functools

import jax
import jax.numpy as jnp
from jax.experimental import pallas as pl
from jax.experimental.pallas import tpu as pltpu

LANE = 128       # vreg lane width -> last-dim padding unit
SUBLANE = 8      # vreg sublane count -> batch padding unit
_NEG_BIG = -1e9  # bias value for padded hidden lanes: sigmoid(-1e9) == 0.0


def _round_up(n, m):
    return ((n + m - 1) // m) * m


def _make_dbn_kernel(num_layers):
    """Build a fused kernel for `num_layers` stacked RBM layers.

    Ref order: [v, (W_0, bh_0, u_0), ..., (W_{L-1}, bh_{L-1}, u_{L-1}), out]
    """

    def kernel(*refs):
        v_ref = refs[0]
        out_ref = refs[-1]
        layer_refs = refs[1:-1]

        # Activations live in vregs/VMEM for the whole chain (no HBM round-trip).
        x = v_ref[...].astype(jnp.bfloat16)
        for i in range(num_layers):
            w_ref = layer_refs[3 * i + 0]   # (F_pad, H_pad) bf16
            bh_ref = layer_refs[3 * i + 1]  # (1, H_pad)     f32
            u_ref = layer_refs[3 * i + 2]   # (TB, H_pad)    f32 uniforms

            # MXU matmul with f32 accumulation; bias + sigmoid in f32.
            logits = jnp.dot(x, w_ref[...], preferred_element_type=jnp.float32)
            logits = logits + bh_ref[...]
            p = jax.nn.sigmoid(logits)

            # Bernoulli sample: 1 with probability p.  Padded lanes have
            # p == 0.0 exactly (bias -1e9), so they sample to 0.
            h = u_ref[...] < p
            x = h.astype(jnp.bfloat16)

        out_ref[...] = x.astype(out_ref.dtype)

    return kernel


def dbn_forward(x, weights_padded, biases_padded, num_hidden_list, key,
                *, batch_tile=256):
    """Fused DBN forward.  weights_padded[i]: (F_pad_i, H_pad_i) bf16,
    biases_padded[i]: (1, H_pad_i) f32 with -1e9 in padded lanes."""
    B, V = x.shape
    num_layers = len(weights_padded)
    v_pad = weights_padded[0].shape[0]
    h_pads = [w.shape[1] for w in weights_padded]

    # Batch tiling: TB multiple of 8, grid over padded batch.
    tb = min(batch_tile, _round_up(B, SUBLANE))
    tb = _round_up(tb, SUBLANE)
    b_pad = _round_up(B, tb)
    n_tiles = b_pad // tb

    # Zero-pad the visible input; padded rows/cols are inert because the
    # padded rows of W_0 are zero and padded batch rows are sliced off below.
    x_p = jnp.zeros((b_pad, v_pad), jnp.float32).at[:B, :V].set(
        x.astype(jnp.float32))

    # Fresh per-layer uniforms (stand-in for torch.bernoulli's RNG).
    uniforms = []
    for hp in h_pads:
        key, sub = jax.random.split(key)
        uniforms.append(jax.random.uniform(sub, (b_pad, hp), dtype=jnp.float32))

    in_specs = [pl.BlockSpec((tb, v_pad), lambda i: (i, 0))]
    args = [x_p]
    for li in range(num_layers):
        f_pad = weights_padded[li].shape[0]
        h_pad = h_pads[li]
        in_specs += [
            # Weights/bias: same block every grid step -> fetched once.
            pl.BlockSpec((f_pad, h_pad), lambda i: (0, 0)),
            pl.BlockSpec((1, h_pad), lambda i: (0, 0)),
            # Uniforms follow the batch tile.
            pl.BlockSpec((tb, h_pad), lambda i: (i, 0)),
        ]
        args += [weights_padded[li], biases_padded[li], uniforms[li]]

    out_spec = pl.BlockSpec((tb, h_pads[-1]), lambda i: (i, 0))
    out_shape = jax.ShapeDtypeStruct((b_pad, h_pads[-1]), jnp.float32)

    # Advisory cost estimate so XLA can schedule around the fused call.
    flops = 2 * b_pad * sum(w.shape[0] * w.shape[1] for w in weights_padded)
    transcendentals = b_pad * sum(h_pads)
    bytes_accessed = (
        x_p.size * 4
        + sum(w.size * 2 for w in weights_padded)
        + sum(b.size * 4 for b in biases_padded)
        + sum(u.size * 4 for u in uniforms)
        + b_pad * h_pads[-1] * 4
    )

    out = pl.pallas_call(
        _make_dbn_kernel(num_layers),
        out_shape=out_shape,
        grid=(n_tiles,),
        in_specs=in_specs,
        out_specs=out_spec,
        compiler_params=pltpu.CompilerParams(
            dimension_semantics=("parallel",)),
        cost_estimate=pl.CostEstimate(
            flops=int(flops),
            transcendentals=int(transcendentals),
            bytes_accessed=int(bytes_accessed)),
    )(*args)

    # Strip batch / hidden padding.
    return out[:B, :num_hidden_list[-1]]


class DBNPallas:
    """JAX/Pallas port of the PyTorch DBN forward pass (stack of RBMs)."""

    def __init__(self, num_visible, num_hidden_list, key):
        self.num_visible = num_visible
        self.num_hidden_list = list(num_hidden_list)

        # Unpadded parameters, mirroring the PyTorch module.
        self.params = []          # (W f32, bv f32, bh f32) per layer
        # Kernel-ready (padded, bf16 weights) versions, built once.
        self.weights_padded = []  # (F_pad, H_pad) bf16
        self.biases_padded = []   # (1, H_pad)     f32

        in_size = num_visible
        in_pad = _round_up(num_visible, LANE)
        for num_hidden in num_hidden_list:
            key, wkey = jax.random.split(key)
            W = jax.random.normal(wkey, (in_size, num_hidden), dtype=jnp.float32)
            bv = jnp.zeros((in_size,), dtype=jnp.float32)
            bh = jnp.zeros((num_hidden,), dtype=jnp.float32)
            self.params.append((W, bv, bh))

            h_pad = _round_up(num_hidden, LANE)
            W_p = (jnp.zeros((in_pad, h_pad), jnp.float32)
                   .at[:in_size, :num_hidden].set(W)
                   .astype(jnp.bfloat16))
            bh_p = (jnp.full((1, h_pad), _NEG_BIG, jnp.float32)
                    .at[0, :num_hidden].set(bh))
            self.weights_padded.append(W_p)
            self.biases_padded.append(bh_p)

            in_size, in_pad = num_hidden, h_pad

    def forward(self, x, key):
        # Matches DBN.forward: x = rbm(x) for each rbm, fused into one kernel.
        return dbn_forward(x, self.weights_padded, self.biases_padded,
                           self.num_hidden_list, key)

    # TODO(synk): DBN.backward / pretrain (RBM.backward, optimizer, BCE loss)
    # are training-time utilities and are not part of the forward hot path.


if __name__ == "__main__":
    key = jax.random.PRNGKey(0)
    key, xkey, mkey, skey = jax.random.split(key, 4)

    batch = 4
    num_visible = 16
    num_hidden_list = [32, 16, 8]

    # Binary-ish visible input (like what an RBM would normally consume).
    x = (jax.random.uniform(xkey, (batch, num_visible)) > 0.5).astype(jnp.float32)

    dbn = DBNPallas(num_visible, num_hidden_list, mkey)
    out = dbn.forward(x, skey)
    out = jax.block_until_ready(out)

    assert out.shape == (batch, num_hidden_list[-1]), out.shape
    assert out.dtype == jnp.float32
    # Bernoulli samples must be exactly 0/1.
    assert bool(jnp.all((out == 0.0) | (out == 1.0)))

    print("KERNEL_OK")
</pallas_src>

<mosaic_0001>
module attributes {stable_mosaic.version = 11 : i64} {
  func.func @kernel(%arg0: i32, %arg1: memref<8x128xf32, #tpu.memory_space<vmem>>, %arg2: memref<128x128xbf16, #tpu.memory_space<vmem>>, %arg3: memref<1x128xf32, #tpu.memory_space<vmem>>, %arg4: memref<8x128xf32, #tpu.memory_space<vmem>>, %arg5: memref<128x128xbf16, #tpu.memory_space<vmem>>, %arg6: memref<1x128xf32, #tpu.memory_space<vmem>>, %arg7: memref<8x128xf32, #tpu.memory_space<vmem>>, %arg8: memref<128x128xbf16, #tpu.memory_space<vmem>>, %arg9: memref<1x128xf32, #tpu.memory_space<vmem>>, %arg10: memref<8x128xf32, #tpu.memory_space<vmem>>, %arg11: memref<8x128xf32, #tpu.memory_space<vmem>>) attributes {dimension_semantics = [#tpu.dimension_semantics<parallel>], iteration_bounds = array<i64: 1>, scalar_prefetch = 0 : i64, scratch_operands = 0 : i64, tpu.core_type = #tpu.core_type<tc>, window_params = [{transform_indices = @transform_0, window_bounds = array<i64: 8, 128>}, {pipeline_mode = #tpu.pipeline_mode<synchronous>, transform_indices = @transform_1, window_bounds = array<i64: 128, 128>}, {pipeline_mode = #tpu.pipeline_mode<synchronous>, transform_indices = @transform_2, window_bounds = array<i64: 1, 128>}, {transform_indices = @transform_3, window_bounds = array<i64: 8, 128>}, {pipeline_mode = #tpu.pipeline_mode<synchronous>, transform_indices = @transform_4, window_bounds = array<i64: 128, 128>}, {pipeline_mode = #tpu.pipeline_mode<synchronous>, transform_indices = @transform_5, window_bounds = array<i64: 1, 128>}, {transform_indices = @transform_6, window_bounds = array<i64: 8, 128>}, {pipeline_mode = #tpu.pipeline_mode<synchronous>, transform_indices = @transform_7, window_bounds = array<i64: 128, 128>}, {pipeline_mode = #tpu.pipeline_mode<synchronous>, transform_indices = @transform_8, window_bounds = array<i64: 1, 128>}, {transform_indices = @transform_9, window_bounds = array<i64: 8, 128>}, {transform_indices = @transform_10, window_bounds = array<i64: 8, 128>}]} {
    %c0 = arith.constant 0 : index
    %c0_0 = arith.constant 0 : index
    %0 = vector.load %arg1[%c0, %c0_0] : memref<8x128xf32, #tpu.memory_space<vmem>>, vector<8x128xf32>
    %1 = arith.truncf %0 : vector<8x128xf32> to vector<8x128xbf16>
    %c0_1 = arith.constant 0 : index
    %c0_2 = arith.constant 0 : index
    %2 = vector.load %arg2[%c0_1, %c0_2] : memref<128x128xbf16, #tpu.memory_space<vmem>>, vector<128x128xbf16>
    %cst = arith.constant dense<0.000000e+00> : vector<8x128xf32>
    %3 = tpu.matmul %1, %2, %cst {dimension_numbers = #tpu.dot_dimension_numbers<[1], [0], [0], [1], [0, 0, 1, 1], [], []>} : vector<8x128xbf16>, vector<128x128xbf16>, vector<8x128xf32> -> vector<8x128xf32>
    %c0_3 = arith.constant 0 : index
    %c0_4 = arith.constant 0 : index
    %4 = vector.load %arg3[%c0_3, %c0_4] : memref<1x128xf32, #tpu.memory_space<vmem>>, vector<1x128xf32>
    %5 = vector.broadcast %4 : vector<1x128xf32> to vector<8x128xf32>
    %6 = arith.addf %3, %5 : vector<8x128xf32>
    %7 = arith.negf %6 : vector<8x128xf32>
    %8 = math.exp %7 : vector<8x128xf32>
    %cst_5 = arith.constant 1.000000e+00 : f32
    %9 = vector.broadcast %cst_5 : f32 to vector<8x128xf32>
    %10 = arith.addf %9, %8 : vector<8x128xf32>
    %11 = arith.divf %9, %10 : vector<8x128xf32>
    %c0_6 = arith.constant 0 : index
    %c0_7 = arith.constant 0 : index
    %12 = vector.load %arg4[%c0_6, %c0_7] : memref<8x128xf32, #tpu.memory_space<vmem>>, vector<8x128xf32>
    %13 = arith.cmpf olt, %12, %11 : vector<8x128xf32>
    %14 = arith.extui %13 : vector<8x128xi1> to vector<8x128xi32>
    %15 = arith.sitofp %14 : vector<8x128xi32> to vector<8x128xf32>
    %16 = arith.truncf %15 : vector<8x128xf32> to vector<8x128xbf16>
    %c0_8 = arith.constant 0 : index
    %c0_9 = arith.constant 0 : index
    %17 = vector.load %arg5[%c0_8, %c0_9] : memref<128x128xbf16, #tpu.memory_space<vmem>>, vector<128x128xbf16>
    %cst_10 = arith.constant dense<0.000000e+00> : vector<8x128xf32>
    %18 = tpu.matmul %16, %17, %cst_10 {dimension_numbers = #tpu.dot_dimension_numbers<[1], [0], [0], [1], [0, 0, 1, 1], [], []>} : vector<8x128xbf16>, vector<128x128xbf16>, vector<8x128xf32> -> vector<8x128xf32>
    %c0_11 = arith.constant 0 : index
    %c0_12 = arith.constant 0 : index
    %19 = vector.load %arg6[%c0_11, %c0_12] : memref<1x128xf32, #tpu.memory_space<vmem>>, vector<1x128xf32>
    %20 = vector.broadcast %19 : vector<1x128xf32> to vector<8x128xf32>
    %21 = arith.addf %18, %20 : vector<8x128xf32>
    %22 = arith.negf %21 : vector<8x128xf32>
    %23 = math.exp %22 : vector<8x128xf32>
    %cst_13 = arith.constant 1.000000e+00 : f32
    %24 = vector.broadcast %cst_13 : f32 to vector<8x128xf32>
    %25 = arith.addf %24, %23 : vector<8x128xf32>
    %26 = arith.divf %24, %25 : vector<8x128xf32>
    %c0_14 = arith.constant 0 : index
    %c0_15 = arith.constant 0 : index
    %27 = vector.load %arg7[%c0_14, %c0_15] : memref<8x128xf32, #tpu.memory_space<vmem>>, vector<8x128xf32>
    %28 = arith.cmpf olt, %27, %26 : vector<8x128xf32>
    %29 = arith.extui %28 : vector<8x128xi1> to vector<8x128xi32>
    %30 = arith.sitofp %29 : vector<8x128xi32> to vector<8x128xf32>
    %31 = arith.truncf %30 : vector<8x128xf32> to vector<8x128xbf16>
    %c0_16 = arith.constant 0 : index
    %c0_17 = arith.constant 0 : index
    %32 = vector.load %arg8[%c0_16, %c0_17] : memref<128x128xbf16, #tpu.memory_space<vmem>>, vector<128x128xbf16>
    %cst_18 = arith.constant dense<0.000000e+00> : vector<8x128xf32>
    %33 = tpu.matmul %31, %32, %cst_18 {dimension_numbers = #tpu.dot_dimension_numbers<[1], [0], [0], [1], [0, 0, 1, 1], [], []>} : vector<8x128xbf16>, vector<128x128xbf16>, vector<8x128xf32> -> vector<8x128xf32>
    %c0_19 = arith.constant 0 : index
    %c0_20 = arith.constant 0 : index
    %34 = vector.load %arg9[%c0_19, %c0_20] : memref<1x128xf32, #tpu.memory_space<vmem>>, vector<1x128xf32>
    %35 = vector.broadcast %34 : vector<1x128xf32> to vector<8x128xf32>
    %36 = arith.addf %33, %35 : vector<8x128xf32>
    %37 = arith.negf %36 : vector<8x128xf32>
    %38 = math.exp %37 : vector<8x128xf32>
    %cst_21 = arith.constant 1.000000e+00 : f32
    %39 = vector.broadcast %cst_21 : f32 to vector<8x128xf32>
    %40 = arith.addf %39, %38 : vector<8x128xf32>
    %41 = arith.divf %39, %40 : vector<8x128xf32>
    %c0_22 = arith.constant 0 : index
    %c0_23 = arith.constant 0 : index
    %42 = vector.load %arg10[%c0_22, %c0_23] : memref<8x128xf32, #tpu.memory_space<vmem>>, vector<8x128xf32>
    %43 = arith.cmpf olt, %42, %41 : vector<8x128xf32>
    %44 = arith.extui %43 : vector<8x128xi1> to vector<8x128xi32>
    %45 = arith.sitofp %44 : vector<8x128xi32> to vector<8x128xf32>
    %46 = arith.truncf %45 : vector<8x128xf32> to vector<8x128xbf16>
    %47 = arith.extf %46 : vector<8x128xbf16> to vector<8x128xf32>
    %c0_24 = arith.constant 0 : index
    %c0_25 = arith.constant 0 : index
    %48 = vector.load %arg11[%c0_24, %c0_25] : memref<8x128xf32, #tpu.memory_space<vmem>>, vector<8x128xf32>
    tpu.vector_store %arg11[%c0_24, %c0_25], %47 {strides = array<i32>} : memref<8x128xf32, #tpu.memory_space<vmem>>, vector<8x128xf32>,
    return
  }
  func.func @transform_0(%arg0: i32) -> (i32, i32) {
    %c0_i32 = arith.constant 0 : i32
    %c0_i32_0 = arith.constant 0 : i32
    return %arg0, %c0_i32 : i32, i32
  }
  func.func @transform_1(%arg0: i32) -> (i32, i32) {
    %c0_i32 = arith.constant 0 : i32
    %c0_i32_0 = arith.constant 0 : i32
    %c0_i32_1 = arith.constant 0 : i32
    return %c0_i32, %c0_i32_0 : i32, i32
  }
  func.func @transform_2(%arg0: i32) -> (i32, i32) {
    %c0_i32 = arith.constant 0 : i32
    %c0_i32_0 = arith.constant 0 : i32
    %c0_i32_1 = arith.constant 0 : i32
    return %c0_i32, %c0_i32_0 : i32, i32
  }
  func.func @transform_3(%arg0: i32) -> (i32, i32) {
    %c0_i32 = arith.constant 0 : i32
    %c0_i32_0 = arith.constant 0 : i32
    return %arg0, %c0_i32 : i32, i32
  }
  func.func @transform_4(%arg0: i32) -> (i32, i32) {
    %c0_i32 = arith.constant 0 : i32
    %c0_i32_0 = arith.constant 0 : i32
    %c0_i32_1 = arith.constant 0 : i32
    return %c0_i32, %c0_i32_0 : i32, i32
  }
  func.func @transform_5(%arg0: i32) -> (i32, i32) {
    %c0_i32 = arith.constant 0 : i32
    %c0_i32_0 = arith.constant 0 : i32
    %c0_i32_1 = arith.constant 0 : i32
    return %c0_i32, %c0_i32_0 : i32, i32
  }
  func.func @transform_6(%arg0: i32) -> (i32, i32) {
    %c0_i32 = arith.constant 0 : i32
    %c0_i32_0 = arith.constant 0 : i32
    return %arg0, %c0_i32 : i32, i32
  }
  func.func @transform_7(%arg0: i32) -> (i32, i32) {
    %c0_i32 = arith.constant 0 : i32
    %c0_i32_0 = arith.constant 0 : i32
    %c0_i32_1 = arith.constant 0 : i32
    return %c0_i32, %c0_i32_0 : i32, i32
  }
  func.func @transform_8(%arg0: i32) -> (i32, i32) {
    %c0_i32 = arith.constant 0 : i32
    %c0_i32_0 = arith.constant 0 : i32
    %c0_i32_1 = arith.constant 0 : i32
    return %c0_i32, %c0_i32_0 : i32, i32
  }
  func.func @transform_9(%arg0: i32) -> (i32, i32) {
    %c0_i32 = arith.constant 0 : i32
    %c0_i32_0 = arith.constant 0 : i32
    return %arg0, %c0_i32 : i32, i32
  }
  func.func @transform_10(%arg0: i32) -> (i32, i32) {
    %c0_i32 = arith.constant 0 : i32
    %c0_i32_0 = arith.constant 0 : i32
    return %arg0, %c0_i32 : i32, i32
  }
}

</mosaic_0001>

<llo_original>
// kernel: tpu_custom_call.1
$region0: #{tpu_custom_call.1}
  #allocation0 [shape = 'u32[]', space=smem, size = 0x4, offset = 0x4, fixed_abs, tag = 'smem constant byte address 0x4 - core index']
  #allocation1 [shape = 'u32[72,128]{1,0:T(1,128)}', space=vmem, size = 0x9000, scoped, tag = 'internal scratch']
  %s0 = inlined_call_operand.hbm [shape: f32[8,128], index: 0, kind: input, shape index: {}]
  %s1 = inlined_call_operand.hbm [shape: bf16[128,128], index: 1, kind: input, shape index: {}]
  %s2 = inlined_call_operand.hbm [shape: f32[1,128], index: 2, kind: input, shape index: {}]
  %s3 = inlined_call_operand.hbm [shape: f32[8,128], index: 3, kind: input, shape index: {}]
  %s4 = inlined_call_operand.hbm [shape: bf16[128,128], index: 4, kind: input, shape index: {}]
  %s5 = inlined_call_operand.hbm [shape: f32[1,128], index: 5, kind: input, shape index: {}]
  %s6 = inlined_call_operand.hbm [shape: f32[8,128], index: 6, kind: input, shape index: {}]
  %s7 = inlined_call_operand.hbm [shape: bf16[128,128], index: 7, kind: input, shape index: {}]
  %s8 = inlined_call_operand.hbm [shape: f32[1,128], index: 8, kind: input, shape index: {}]
  %s9 = inlined_call_operand.vmem [shape: f32[8,128], index: 9, kind: input, shape index: {}]
  %s10 = inlined_call_operand.hbm [shape: f32[8,128], index: 10, kind: output, shape index: {}]
  %s11 = sld [smem:[#allocation0]]
  $region86: #{tpu_custom_call.1} parent=0
    _
  %s13 = ssub.s32 1, %s11
  %s14 = scalar_select 0, %s13, %s11
  $region1: #{tpu_custom_call.1} parent=0
    #allocation2 [shape = 'u8[4096]{0}', space=vmem, size = 0x1000, scoped, tag = 'input window, operand 0, single buffered']
    #allocation3 [shape = 's32[1]{0}', space=sflag, size = 0x4, scoped, tag = 'scoped memory for tpu_custom_call.1']
    #allocation4 [shape = 's32[1]{0}', space=sflag, size = 0x4, scoped, tag = 'scoped memory for tpu_custom_call.1']
    #allocation5 [shape = 'u8[32768]{0}', space=vmem, size = 0x8000, scoped, tag = 'input window, operand 1, single buffered']
    #allocation6 [shape = 's32[1]{0}', space=sflag, size = 0x4, scoped, tag = 'scoped memory for tpu_custom_call.1']
    #allocation7 [shape = 'u8[512]{0}', space=vmem, size = 0x400, scoped, tag = 'input window, operand 2, single buffered']
    #allocation8 [shape = 'u8[4096]{0}', space=vmem, size = 0x1000, scoped, tag = 'input window, operand 3, single buffered']
    #allocation9 [shape = 's32[1]{0}', space=sflag, size = 0x4, scoped, tag = 'scoped memory for tpu_custom_call.1']
    #allocation10 [shape = 'u8[32768]{0}', space=vmem, size = 0x8000, scoped, tag = 'input window, operand 4, single buffered']
    #allocation11 [shape = 'u8[512]{0}', space=vmem, size = 0x400, scoped, tag = 'input window, operand 5, single buffered']
    #allocation12 [shape = 's32[1]{0}', space=sflag, size = 0x4, scoped, tag = 'scoped memory for tpu_custom_call.1']
    #allocation13 [shape = 'u8[4096]{0}', space=vmem, size = 0x1000, scoped, tag = 'input window, operand 6, single buffered']
    #allocation14 [shape = 'u8[32768]{0}', space=vmem, size = 0x8000, scoped, tag = 'input window, operand 7, single buffered']
    #allocation15 [shape = 's32[1]{0}', space=sflag, size = 0x4, scoped, tag = 'scoped memory for tpu_custom_call.1']
    #allocation16 [shape = 'u8[512]{0}', space=vmem, size = 0x400, scoped, tag = 'input window, operand 8, single buffered']
    #allocation17 [shape = 'u8[4096]{0}', space=vmem, size = 0x1000, scoped, tag = 'output window, operand 0, single buffered']
    %15 = vsyncpa [#allocation3], 0
    %16 = vsyncpa [#allocation6], 0
    %17 = vsyncpa [#allocation9], 0
    %18 = vsyncpa [#allocation12], 0
    %19 = vsyncpa [#allocation15], 0
    %20 = vsyncpa [#allocation4], 0
    // Predicated region
    $region2: #{tpu_custom_call.1} parent=1 // pred_check
      _
    $region3: #{tpu_custom_call.1} parent=1 // pred_check_branch
      %22 = sbr.rel (0) target = $region5
    $region4: #{tpu_custom_call.1} parent=1 // pred_region
      %24 = vsyncadd [#allocation3], 0
      %s26 = sshll.u32 %s0, 4
      %s27 = int_to_ptr.hbm [resolvable:$true] %s26
      %s28 = sshll.u32 [#allocation2], 4
      %s29 = int_to_ptr.vmem [resolvable:$true] %s28
      %31 = dma.hbm_to_vmem [thread:$0]  %s27, 128, %s29, [#allocation3]
    $region5: #{tpu_custom_call.1} parent=1 // pred_fallthru
      _
    // Predicated region
    $region6: #{tpu_custom_call.1} parent=1 // pred_check
      _
    $region7: #{tpu_custom_call.1} parent=1 // pred_check_branch
      %33 = sbr.rel (0) target = $region9
    $region8: #{tpu_custom_call.1} parent=1 // pred_region
      %35 = vsyncadd [#allocation6], 0
      %s36 = sshll.u32 %s1, 4
      %s37 = int_to_ptr.hbm [resolvable:$true] %s36
      %s38 = sshll.u32 [#allocation5], 4
      %s39 = int_to_ptr.vmem [resolvable:$true] %s38
      %44 = dma.hbm_to_vmem [thread:$0]  %s37, 1024, %s39, [#allocation6], 64, 64, 4
    $region9: #{tpu_custom_call.1} parent=1 // pred_fallthru
      _
    // Predicated region
    $region10: #{tpu_custom_call.1} parent=1 // pred_check
      _
    $region11: #{tpu_custom_call.1} parent=1 // pred_check_branch
      %46 = sbr.rel (0) target = $region13
    $region12: #{tpu_custom_call.1} parent=1 // pred_region
      %48 = vsyncadd [#allocation6], 0
      %s50 = sshll.u32 %s2, 4
      %s51 = int_to_ptr.hbm [resolvable:$true] %s50
      %s52 = sshll.u32 [#allocation7], 4
      %s53 = int_to_ptr.vmem [resolvable:$true] %s52
      %55 = dma.hbm_to_vmem [thread:$0]  %s51, 16, %s53, [#allocation6]
    $region13: #{tpu_custom_call.1} parent=1 // pred_fallthru
      _
    // Predicated region
    $region14: #{tpu_custom_call.1} parent=1 // pred_check
      _
    $region15: #{tpu_custom_call.1} parent=1 // pred_check_branch
      %57 = sbr.rel (0) target = $region17
    $region16: #{tpu_custom_call.1} parent=1 // pred_region
      %59 = vsyncadd [#allocation9], 0
      %s61 = sshll.u32 %s3, 4
      %s62 = int_to_ptr.hbm [resolvable:$true] %s61
      %s63 = sshll.u32 [#allocation8], 4
      %s64 = int_to_ptr.vmem [resolvable:$true] %s63
      %66 = dma.hbm_to_vmem [thread:$0]  %s62, 128, %s64, [#allocation9]
    $region17: #{tpu_custom_call.1} parent=1 // pred_fallthru
      _
    // Predicated region
    $region18: #{tpu_custom_call.1} parent=1 // pred_check
      _
    $region19: #{tpu_custom_call.1} parent=1 // pred_check_branch
      %68 = sbr.rel (0) target = $region21
    $region20: #{tpu_custom_call.1} parent=1 // pred_region
      %70 = vsyncadd [#allocation9], 0
      %s71 = sshll.u32 %s4, 4
      %s72 = int_to_ptr.hbm [resolvable:$true] %s71
      %s73 = sshll.u32 [#allocation10], 4
      %s74 = int_to_ptr.vmem [resolvable:$true] %s73
      %79 = dma.hbm_to_vmem [thread:$0]  %s72, 1024, %s74, [#allocation9], 64, 64, 4
    $region21: #{tpu_custom_call.1} parent=1 // pred_fallthru
      _
    // Predicated region
    $region22: #{tpu_custom_call.1} parent=1 // pred_check
      _
    $region23: #{tpu_custom_call.1} parent=1 // pred_check_branch
      %81 = sbr.rel (0) target = $region25
    $region24: #{tpu_custom_call.1} parent=1 // pred_region
      %83 = vsyncadd [#allocation12], 0
      %s85 = sshll.u32 %s5, 4
      %s86 = int_to_ptr.hbm [resolvable:$true] %s85
      %s87 = sshll.u32 [#allocation11], 4
      %s88 = int_to_ptr.vmem [resolvable:$true] %s87
      %90 = dma.hbm_to_vmem [thread:$0]  %s86, 16, %s88, [#allocation12]
    $region25: #{tpu_custom_call.1} parent=1 // pred_fallthru
      _
    // Predicated region
    $region26: #{tpu_custom_call.1} parent=1 // pred_check
      _
    $region27: #{tpu_custom_call.1} parent=1 // pred_check_branch
      %92 = sbr.rel (0) target = $region29
    $region28: #{tpu_custom_call.1} parent=1 // pred_region
      %94 = vsyncadd [#allocation12], 0
      %s96 = sshll.u32 %s6, 4
      %s97 = int_to_ptr.hbm [resolvable:$true] %s96
      %s98 = sshll.u32 [#allocation13], 4
      %s99 = int_to_ptr.vmem [resolvable:$true] %s98
      %101 = dma.hbm_to_vmem [thread:$0]  %s97, 128, %s99, [#allocation12]
    $region29: #{tpu_custom_call.1} parent=1 // pred_fallthru
      _
    // Predicated region
    $region30: #{tpu_custom_call.1} parent=1 // pred_check
      _
    $region31: #{tpu_custom_call.1} parent=1 // pred_check_branch
      %103 = sbr.rel (0) target = $region33
    $region32: #{tpu_custom_call.1} parent=1 // pred_region
      %105 = vsyncadd [#allocation15], 0
      %s106 = sshll.u32 %s7, 4
      %s107 = int_to_ptr.hbm [resolvable:$true] %s106
      %s108 = sshll.u32 [#allocation14], 4
      %s109 = int_to_ptr.vmem [resolvable:$true] %s108
      %114 = dma.hbm_to_vmem [thread:$0]  %s107, 1024, %s109, [#allocation15], 64, 64, 4
    $region33: #{tpu_custom_call.1} parent=1 // pred_fallthru
      _
    // Predicated region
    $region34: #{tpu_custom_call.1} parent=1 // pred_check
      _
    $region35: #{tpu_custom_call.1} parent=1 // pred_check_branch
      %116 = sbr.rel (0) target = $region37
    $region36: #{tpu_custom_call.1} parent=1 // pred_region
      %118 = vsyncadd [#allocation15], 0
      %s120 = sshll.u32 %s8, 4
      %s121 = int_to_ptr.hbm [resolvable:$true] %s120
      %s122 = sshll.u32 [#allocation16], 4
      %s123 = int_to_ptr.vmem [resolvable:$true] %s122
      %125 = dma.hbm_to_vmem [thread:$0]  %s121, 16, %s123, [#allocation15]
    $region37: #{tpu_custom_call.1} parent=1 // pred_fallthru
      _
    // Predicated region
    $region38: #{tpu_custom_call.1} parent=1 // pred_check
      _
    $region39: #{tpu_custom_call.1} parent=1 // pred_check_branch
      %127 = sbr.rel (0) target = $region41
    $region40: #{tpu_custom_call.1} parent=1 // pred_region
      _
    $region41: #{tpu_custom_call.1} parent=1 // pred_fallthru
      _
    // Predicated region
    $region42: #{tpu_custom_call.1} parent=1 // pred_check
      _
    $region43: #{tpu_custom_call.1} parent=1 // pred_check_branch
      %129 = sbr.rel (0) target = $region45
    $region44: #{tpu_custom_call.1} parent=1 // pred_region
      %131 = dma.done [#allocation3], 128
    $region45: #{tpu_custom_call.1} parent=1 // pred_fallthru
      _
    // Predicated region
    $region46: #{tpu_custom_call.1} parent=1 // pred_check
      _
    $region47: #{tpu_custom_call.1} parent=1 // pred_check_branch
      %133 = sbr.rel (0) target = $region49
    $region48: #{tpu_custom_call.1} parent=1 // pred_region
      %135 = dma.done [#allocation6], 1024
    $region49: #{tpu_custom_call.1} parent=1 // pred_fallthru
      _
    // Predicated region
    $region50: #{tpu_custom_call.1} parent=1 // pred_check
      _
    $region51: #{tpu_custom_call.1} parent=1 // pred_check_branch
      %137 = sbr.rel (0) target = $region53
    $region52: #{tpu_custom_call.1} parent=1 // pred_region
      %139 = dma.done [#allocation6], 16
    $region53: #{tpu_custom_call.1} parent=1 // pred_fallthru
      _
    // Predicated region
    $region54: #{tpu_custom_call.1} parent=1 // pred_check
      _
    $region55: #{tpu_custom_call.1} parent=1 // pred_check_branch
      %141 = sbr.rel (0) target = $region57
    $region56: #{tpu_custom_call.1} parent=1 // pred_region
      %143 = dma.done [#allocation9], 128
    $region57: #{tpu_custom_call.1} parent=1 // pred_fallthru
      _
    // Predicated region
    $region58: #{tpu_custom_call.1} parent=1 // pred_check
      _
    $region59: #{tpu_custom_call.1} parent=1 // pred_check_branch
      %145 = sbr.rel (0) target = $region61
    $region60: #{tpu_custom_call.1} parent=1 // pred_region
      %147 = dma.done [#allocation9], 1024
    $region61: #{tpu_custom_call.1} parent=1 // pred_fallthru
      _
    // Predicated region
    $region62: #{tpu_custom_call.1} parent=1 // pred_check
      _
    $region63: #{tpu_custom_call.1} parent=1 // pred_check_branch
      %149 = sbr.rel (0) target = $region65
    $region64: #{tpu_custom_call.1} parent=1 // pred_region
      %151 = dma.done [#allocation12], 16
    $region65: #{tpu_custom_call.1} parent=1 // pred_fallthru
      _
    // Predicated region
    $region66: #{tpu_custom_call.1} parent=1 // pred_check
      _
    $region67: #{tpu_custom_call.1} parent=1 // pred_check_branch
      %153 = sbr.rel (0) target = $region69
    $region68: #{tpu_custom_call.1} parent=1 // pred_region
      %155 = dma.done [#allocation12], 128
    $region69: #{tpu_custom_call.1} parent=1 // pred_fallthru
      _
    // Predicated region
    $region70: #{tpu_custom_call.1} parent=1 // pred_check
      _
    $region71: #{tpu_custom_call.1} parent=1 // pred_check_branch
      %157 = sbr.rel (0) target = $region73
    $region72: #{tpu_custom_call.1} parent=1 // pred_region
      %159 = dma.done [#allocation15], 1024
    $region73: #{tpu_custom_call.1} parent=1 // pred_fallthru
      _
    // Predicated region
    $region74: #{tpu_custom_call.1} parent=1 // pred_check
      _
    $region75: #{tpu_custom_call.1} parent=1 // pred_check_branch
      %161 = sbr.rel (0) target = $region77
    $region76: #{tpu_custom_call.1} parent=1 // pred_region
      %163 = dma.done [#allocation15], 16
    $region77: #{tpu_custom_call.1} parent=1 // pred_fallthru
      _
    %v164 = vld [vmem:[#allocation2] sm:$0xff]
    %v165 = vpack.c.bf16 %v164, %v164
    %v166 = vld [vmem:[#allocation5] sm:$0xf]
    %v167 = vld [vmem:[#allocation5 + $0x4] sm:$0xf]
    %v168 = vld [vmem:[#allocation5 + $0x8] sm:$0xf]
    %v169 = vld [vmem:[#allocation5 + $0xc] sm:$0xf]
    %v170 = vld [vmem:[#allocation5 + $0x10] sm:$0xf]
    %v171 = vld [vmem:[#allocation5 + $0x14] sm:$0xf]
    %v172 = vld [vmem:[#allocation5 + $0x18] sm:$0xf]
    %v173 = vld [vmem:[#allocation5 + $0x1c] sm:$0xf]
    %v174 = vld [vmem:[#allocation5 + $0x20] sm:$0xf]
    %v175 = vld [vmem:[#allocation5 + $0x24] sm:$0xf]
    %v176 = vld [vmem:[#allocation5 + $0x28] sm:$0xf]
    %v177 = vld [vmem:[#allocation5 + $0x2c] sm:$0xf]
    %v178 = vld [vmem:[#allocation5 + $0x30] sm:$0xf]
    %v179 = vld [vmem:[#allocation5 + $0x34] sm:$0xf]
    %v180 = vld [vmem:[#allocation5 + $0x38] sm:$0xf]
    %v181 = vld [vmem:[#allocation5 + $0x3c] sm:$0xf]
    %v182 = vld [vmem:[#allocation7] sm:$0x1]
    %v184 = vperm.slane %v182, 0
    %v202 = vunpack.c.l.b16 %v166
    %v203 = vunpack.c.l.b16 %v167
    %v204 = vunpack.c.l.b16 %v168
    %v205 = vunpack.c.l.b16 %v169
    %v206 = vunpack.c.l.b16 %v170
    %v207 = vunpack.c.l.b16 %v171
    %v208 = vunpack.c.l.b16 %v172
    %v209 = vunpack.c.l.b16 %v173
    %v210 = vunpack.c.l.b16 %v174
    %v211 = vunpack.c.l.b16 %v175
    %v212 = vunpack.c.l.b16 %v176
    %v213 = vunpack.c.l.b16 %v177
    %v214 = vunpack.c.l.b16 %v178
    %v215 = vunpack.c.l.b16 %v179
    %v216 = vunpack.c.l.b16 %v180
    %v217 = vunpack.c.l.b16 %v181
    %v218 = vpack.c.b16 %v203, %v202
    %v219 = vpack.c.b16 %v205, %v204
    %v220 = vpack.c.b16 %v207, %v206
    %v221 = vpack.c.b16 %v209, %v208
    %v222 = vpack.c.b16 %v211, %v210
    %v223 = vpack.c.b16 %v213, %v212
    %v224 = vpack.c.b16 %v215, %v214
    %v225 = vpack.c.b16 %v217, %v216
    %234 = vmatpush.bf16.msra.mxu0 %v225
    %235 = vmatpush.bf16.msra.mxu0 %v224
    %236 = vmatpush.bf16.msra.mxu0 %v223
    %237 = vmatpush.bf16.msra.mxu0 %v222
    %238 = vmatpush.bf16.msra.mxu0 %v221
    %239 = vmatpush.bf16.msra.mxu0 %v220
    %240 = vmatpush.bf16.msra.mxu0 %v219
    %241 = vmatpush.bf16.msra.mxu0 %v218
    %242 = vmatmul.bf16.gmra.mxu0 %v165
    %v243 = vpop.f32.mrf.mxu0
    %v244 = vadd.f32 %v184, %v243
    %v245 = vpop.f32.mrf.mxu0
    %246 = vdwg.mxu0
    %v247 = vxor.u32 %v244, 2147483648
    %v248 = vmul.f32 %v247, 1.442695
    %v249 = vpow.pop %v248
    %v250 = vadd.f32 %v249, 1.0
    %v251 = vrcp.pop %v250
    %v252 = vmul.f32 %v250, %v251
    %v253 = vsub.f32 1.0, %v252
    %v254 = vmul.f32 %v251, %v253
    %v255 = vadd.f32 %v251, %v254
    %vm256 = vweird.f32 %v250
    %vm257 = vweird.f32 %v251
    %vm258 = vmor %vm256, %vm257
    %v259 = vsel %vm258, %v251, %v255
    %v260 = vand.u32 2147483647, %v250
    %vm261 = vcmp.eq.f32.partialorder %v260, 8.507059e+37
    %v262 = vand.u32 %v250, 2147483648
    %v263 = vor.u32 1.1754944e-38, %v262
    %v264 = vsel %vm261, %v263, %v259
    %v265 = vmul.f32 1.0, %v264
    %v266 = vld [vmem:[#allocation8] sm:$0xff]
    %vm267 = vcmp.lt.f32.partialorder %v266, %v265
    %v268 = vsel %vm267, 1, 0
    %v269 = vcvt.s32.f32 %v268
    %v270 = vpack.c.bf16 %v269, %v269
    %v271 = vld [vmem:[#allocation10] sm:$0xf]
    %v272 = vld [vmem:[#allocation10 + $0x4] sm:$0xf]
    %v273 = vld [vmem:[#allocation10 + $0x8] sm:$0xf]
    %v274 = vld [vmem:[#allocation10 + $0xc] sm:$0xf]
    %v275 = vld [vmem:[#allocation10 + $0x10] sm:$0xf]
    %v276 = vld [vmem:[#allocation10 + $0x14] sm:$0xf]
    %v277 = vld [vmem:[#allocation10 + $0x18] sm:$0xf]
    %v278 = vld [vmem:[#allocation10 + $0x1c] sm:$0xf]
    %v279 = vld [vmem:[#allocation10 + $0x20] sm:$0xf]
    %v280 = vld [vmem:[#allocation10 + $0x24] sm:$0xf]
    %v281 = vld [vmem:[#allocation10 + $0x28] sm:$0xf]
    %v282 = vld [vmem:[#allocation10 + $0x2c] sm:$0xf]
    %v283 = vld [vmem:[#allocation10 + $0x30] sm:$0xf]
    %v284 = vld [vmem:[#allocation10 + $0x34] sm:$0xf]
    %v285 = vld [vmem:[#allocation10 + $0x38] sm:$0xf]
    %v286 = vld [vmem:[#allocation10 + $0x3c] sm:$0xf]
    %v287 = vld [vmem:[#allocation11] sm:$0x1]
    %v289 = vperm.slane %v287, 0
    %v307 = vunpack.c.l.b16 %v271
    %v308 = vunpack.c.l.b16 %v272
    %v309 = vunpack.c.l.b16 %v273
    %v310 = vunpack.c.l.b16 %v274
    %v311 = vunpack.c.l.b16 %v275
    %v312 = vunpack.c.l.b16 %v276
    %v313 = vunpack.c.l.b16 %v277
    %v314 = vunpack.c.l.b16 %v278
    %v315 = vunpack.c.l.b16 %v279
    %v316 = vunpack.c.l.b16 %v280
    %v317 = vunpack.c.l.b16 %v281
    %v318 = vunpack.c.l.b16 %v282
    %v319 = vunpack.c.l.b16 %v283
    %v320 = vunpack.c.l.b16 %v284
    %v321 = vunpack.c.l.b16 %v285
    %v322 = vunpack.c.l.b16 %v286
    %v323 = vpack.c.b16 %v308, %v307
    %v324 = vpack.c.b16 %v310, %v309
    %v325 = vpack.c.b16 %v312, %v311
    %v326 = vpack.c.b16 %v314, %v313
    %v327 = vpack.c.b16 %v316, %v315
    %v328 = vpack.c.b16 %v318, %v317
    %v329 = vpack.c.b16 %v320, %v319
    %v330 = vpack.c.b16 %v322, %v321
    %339 = vmatpush.bf16.msra.mxu0 %v330
    %340 = vmatpush.bf16.msra.mxu0 %v329
    %341 = vmatpush.bf16.msra.mxu0 %v328
    %342 = vmatpush.bf16.msra.mxu0 %v327
    %343 = vmatpush.bf16.msra.mxu0 %v326
    %344 = vmatpush.bf16.msra.mxu0 %v325
    %345 = vmatpush.bf16.msra.mxu0 %v324
    %346 = vmatpush.bf16.msra.mxu0 %v323
    %347 = vmatmul.bf16.gmra.mxu0 %v270
    %v348 = vpop.f32.mrf.mxu0
    %v349 = vadd.f32 %v289, %v348
    %v350 = vpop.f32.mrf.mxu0
    %351 = vdwg.mxu0
    %v352 = vxor.u32 %v349, 2147483648
    %v353 = vmul.f32 %v352, 1.442695
    %v354 = vpow.pop %v353
    %v355 = vadd.f32 %v354, 1.0
    %v356 = vrcp.pop %v355
    %v357 = vmul.f32 %v355, %v356
    %v358 = vsub.f32 1.0, %v357
    %v359 = vmul.f32 %v356, %v358
    %v360 = vadd.f32 %v356, %v359
    %vm361 = vweird.f32 %v355
    %vm362 = vweird.f32 %v356
    %vm363 = vmor %vm361, %vm362
    %v364 = vsel %vm363, %v356, %v360
    %v365 = vand.u32 2147483647, %v355
    %vm366 = vcmp.eq.f32.partialorder %v365, 8.507059e+37
    %v367 = vand.u32 %v355, 2147483648
    %v368 = vor.u32 1.1754944e-38, %v367
    %v369 = vsel %vm366, %v368, %v364
    %v370 = vmul.f32 1.0, %v369
    %v371 = vld [vmem:[#allocation13] sm:$0xff]
    %vm372 = vcmp.lt.f32.partialorder %v371, %v370
    %v373 = vsel %vm372, 1, 0
    %v374 = vcvt.s32.f32 %v373
    %v375 = vpack.c.bf16 %v374, %v374
    %v376 = vld [vmem:[#allocation14] sm:$0xf]
    %v377 = vld [vmem:[#allocation14 + $0x4] sm:$0xf]
    %v378 = vld [vmem:[#allocation14 + $0x8] sm:$0xf]
    %v379 = vld [vmem:[#allocation14 + $0xc] sm:$0xf]
    %v380 = vld [vmem:[#allocation14 + $0x10] sm:$0xf]
    %v381 = vld [vmem:[#allocation14 + $0x14] sm:$0xf]
    %v382 = vld [vmem:[#allocation14 + $0x18] sm:$0xf]
    %v383 = vld [vmem:[#allocation14 + $0x1c] sm:$0xf]
    %v384 = vld [vmem:[#allocation14 + $0x20] sm:$0xf]
    %v385 = vld [vmem:[#allocation14 + $0x24] sm:$0xf]
    %v386 = vld [vmem:[#allocation14 + $0x28] sm:$0xf]
    %v387 = vld [vmem:[#allocation14 + $0x2c] sm:$0xf]
    %v388 = vld [vmem:[#allocation14 + $0x30] sm:$0xf]
    %v389 = vld [vmem:[#allocation14 + $0x34] sm:$0xf]
    %v390 = vld [vmem:[#allocation14 + $0x38] sm:$0xf]
    %v391 = vld [vmem:[#allocation14 + $0x3c] sm:$0xf]
    %v392 = vld [vmem:[#allocation16] sm:$0x1]
    %v394 = vperm.slane %v392, 0
    %v412 = vunpack.c.l.b16 %v376
    %v413 = vunpack.c.l.b16 %v377
    %v414 = vunpack.c.l.b16 %v378
    %v415 = vunpack.c.l.b16 %v379
    %v416 = vunpack.c.l.b16 %v380
    %v417 = vunpack.c.l.b16 %v381
    %v418 = vunpack.c.l.b16 %v382
    %v419 = vunpack.c.l.b16 %v383
    %v420 = vunpack.c.l.b16 %v384
    %v421 = vunpack.c.l.b16 %v385
    %v422 = vunpack.c.l.b16 %v386
    %v423 = vunpack.c.l.b16 %v387
    %v424 = vunpack.c.l.b16 %v388
    %v425 = vunpack.c.l.b16 %v389
    %v426 = vunpack.c.l.b16 %v390
    %v427 = vunpack.c.l.b16 %v391
    %v428 = vpack.c.b16 %v413, %v412
    %v429 = vpack.c.b16 %v415, %v414
    %v430 = vpack.c.b16 %v417, %v416
    %v431 = vpack.c.b16 %v419, %v418
    %v432 = vpack.c.b16 %v421, %v420
    %v433 = vpack.c.b16 %v423, %v422
    %v434 = vpack.c.b16 %v425, %v424
    %v435 = vpack.c.b16 %v427, %v426
    %444 = vmatpush.bf16.msra.mxu0 %v435
    %445 = vmatpush.bf16.msra.mxu0 %v434
    %446 = vmatpush.bf16.msra.mxu0 %v433
    %447 = vmatpush.bf16.msra.mxu0 %v432
    %448 = vmatpush.bf16.msra.mxu0 %v431
    %449 = vmatpush.bf16.msra.mxu0 %v430
    %450 = vmatpush.bf16.msra.mxu0 %v429
    %451 = vmatpush.bf16.msra.mxu0 %v428
    %452 = vmatmul.bf16.gmra.mxu0 %v375
    %v453 = vpop.f32.mrf.mxu0
    %v454 = vadd.f32 %v394, %v453
    %v455 = vpop.f32.mrf.mxu0
    %456 = vdwg.mxu0
    %v457 = vxor.u32 %v454, 2147483648
    %v458 = vmul.f32 %v457, 1.442695
    %v459 = vpow.pop %v458
    %v460 = vadd.f32 %v459, 1.0
    %v461 = vrcp.pop %v460
    %v462 = vmul.f32 %v460, %v461
    %v463 = vsub.f32 1.0, %v462
    %v464 = vmul.f32 %v461, %v463
    %v465 = vadd.f32 %v461, %v464
    %vm466 = vweird.f32 %v460
    %vm467 = vweird.f32 %v461
    %vm468 = vmor %vm466, %vm467
    %v469 = vsel %vm468, %v461, %v465
    %v470 = vand.u32 2147483647, %v460
    %vm471 = vcmp.eq.f32.partialorder %v470, 8.507059e+37
    %v472 = vand.u32 %v460, 2147483648
    %v473 = vor.u32 1.1754944e-38, %v472
    %v474 = vsel %vm471, %v473, %v469
    %v475 = vmul.f32 1.0, %v474
    %v476 = vld [vmem:[%s9] sm:$0xff]
    %vm477 = vcmp.lt.f32.partialorder %v476, %v475
    %v478 = vsel %vm477, 1, 0
    %v479 = vcvt.s32.f32 %v478
    %v480 = vpack.c.bf16 %v479, %v479
    %v481 = vunpack.c.l.bf16 %v480
    %482 = vst [vmem:[#allocation17] sm:$0xff] %v481
    // Predicated region
    $region78: #{tpu_custom_call.1} parent=1 // pred_check
      _
    $region79: #{tpu_custom_call.1} parent=1 // pred_check_branch
      %484 = sbr.rel (0) target = $region81
    $region80: #{tpu_custom_call.1} parent=1 // pred_region
      %486 = vsyncadd [#allocation4], 0
      %s488 = sshll.u32 [#allocation17], 4
      %s489 = int_to_ptr.vmem [resolvable:$true] %s488
      %s490 = sshll.u32 %s10, 4
      %s491 = int_to_ptr.hbm [resolvable:$true] %s490
      %493 = dma.vmem_to_hbm [thread:$0]  %s489, 128, %s491, [#allocation4]
    $region81: #{tpu_custom_call.1} parent=1 // pred_fallthru
      _
    // Predicated region
    $region82: #{tpu_custom_call.1} parent=1 // pred_check
      _
    $region83: #{tpu_custom_call.1} parent=1 // pred_check_branch
      %495 = sbr.rel (0) target = $region85
    $region84: #{tpu_custom_call.1} parent=1 // pred_region
      %497 = dma.done [#allocation4], 128
    $region85: #{tpu_custom_call.1} parent=1 // pred_fallthru
      _
    %498 = vsyncpa [#allocation3], 1
    %499 = vsyncpa [#allocation6], 1
    %500 = vsyncpa [#allocation9], 1
    %501 = vsyncpa [#allocation12], 1
    %502 = vsyncpa [#allocation15], 1
    %503 = vsyncpa [#allocation4], 1

</llo_original>
